<compile_context>
chip_gen: v6e
topology: v6e:2x2x1
jax: 0.10.0
libtpu: 0.0.40
codegen_flags: <defaults>
</compile_context>

<pallas_src>
import functools

import jax
import jax.numpy as jnp
from jax import lax
from jax.experimental import pallas as pl
from jax.experimental.pallas import tpu as pltpu


def angleproto_kernel(x_pos_ref, x_full_ref, w_ref, b_ref, loss_ref, prec_ref, anc_ref, *,
                      n_per_speaker, emb_dim, batch, block_rows):
    N, D, B, TB = n_per_speaker, emb_dim, batch, block_rows
    pid = pl.program_id(0)

    @pl.when(pid == 0)
    def _init():
        # Zero padded scratch rows (only read -- then masked -- by a partial last block).
        anc_ref[...] = jnp.zeros_like(anc_ref)
        # Anchor = sum over x[:, 1:, :]; the 1/(N-1) mean scaling is dropped (scale-invariant).
        anc = x_full_ref[:, D:2 * D].astype(jnp.float32)
        for n in range(2, N):                                    # N is small; static unroll
            anc = anc + x_full_ref[:, n * D:(n + 1) * D].astype(jnp.float32)
        inv_an = lax.rsqrt(jnp.maximum(jnp.sum(anc * anc, axis=-1, keepdims=True), 1e-16))
        anc_ref[pl.ds(0, B), :] = (anc * inv_an).astype(anc_ref.dtype)
        loss_ref[0, 0] = 0.0
        prec_ref[0, 0] = 0.0

    # Normalized positive rows for this block.  All VPU/EUP math is f32 (required on v5e);
    # only the MXU operands follow the input dtype (bf16 MXU on the bf16 path).
    pos = x_pos_ref[...].astype(jnp.float32)                     # (TB, D)
    inv_pn = lax.rsqrt(jnp.maximum(jnp.sum(pos * pos, axis=-1, keepdims=True), 1e-16))
    pos_m = (pos * inv_pn).astype(anc_ref.dtype)                 # bf16 iff input was bf16

    w = w_ref[0, 0]
    b = b_ref[0, 0]

    # Cosine matrix straight from the MXU (operands already unit-norm); contract D on both
    # operands -> no transpose copy of the anchor matrix.
    anc_all = anc_ref[pl.ds(0, B), :]                            # (B, D) valid anchor rows
    cos = lax.dot_general(pos_m, anc_all,
                          dimension_numbers=(((1,), (1,)), ((), ())),
                          preferred_element_type=jnp.float32)    # (TB, B)
    logits = cos * w + b

    # Diagonal logit for global row i: cos(pos_i, anc_i), from the same (rounded) operands the
    # MXU saw -- replaces the iota/where/row-reduce diagonal extraction.
    r0 = pid * TB
    anc_diag = anc_ref[pl.ds(r0, TB), :].astype(jnp.float32)     # (TB, D)
    diag = jnp.sum(pos_m.astype(jnp.float32) * anc_diag, axis=-1, keepdims=True) * w + b

    # Cross-entropy with label i for row i:  loss_i = logsumexp(row_i) - logits[i, i]
    m = jnp.max(logits, axis=-1, keepdims=True)                  # (TB, 1)
    lse = m + jnp.log(jnp.sum(jnp.exp(logits - m), axis=-1, keepdims=True))

    # Top-1 accuracy: first index achieving the row max (matches torch argmax tie-break).
    col_idx = lax.broadcasted_iota(jnp.int32, (TB, B), 1)
    amax = jnp.min(jnp.where(logits == m, col_idx, B), axis=-1, keepdims=True)   # (TB, 1)

    grow = r0 + lax.broadcasted_iota(jnp.int32, (TB, 1), 0)      # global row index
    valid = grow < B                                             # mask padded rows of last block
    loss_ref[0, 0] += jnp.sum(jnp.where(valid, lse - diag, 0.0))
    prec_ref[0, 0] += jnp.sum(jnp.where(valid & (amax == grow), 1.0, 0.0))

    @pl.when(pid == pl.num_programs(0) - 1)
    def _finalize():
        loss_ref[0, 0] = loss_ref[0, 0] * (1.0 / B)
        prec_ref[0, 0] = prec_ref[0, 0] * (100.0 / B)


def angleproto_loss(x, w, b):
    """x: (B, nPerSpeaker, D) float32 or bfloat16; w, b: scalars. Returns (nloss, prec1)."""
    B, N, D = x.shape
    assert N >= 2

    # Zero-pad D to a lane-aligned multiple of 128: every in-kernel chunk slice becomes a free,
    # vreg-aligned view, and zero padding changes neither dots nor norms.
    D_pad = ((D + 127) // 128) * 128
    if D_pad != D:
        x = jnp.pad(x, ((0, 0), (0, 0), (0, D_pad - D)))
    x2 = x.reshape(B, N * D_pad)                      # free, contiguous reshape

    # Row tiling over the positive rows.
    TB = B if B <= 256 else 128
    nblocks = -(-B // TB)
    B_pad = nblocks * TB

    anc_dtype = jnp.bfloat16 if x2.dtype == jnp.bfloat16 else jnp.float32
    anc_itemsize = 2 if anc_dtype == jnp.bfloat16 else 4

    w_arr = jnp.full((1, 1), w, dtype=jnp.float32)
    b_arr = jnp.full((1, 1), b, dtype=jnp.float32)

    itemsize = x2.dtype.itemsize
    x_bytes = int(x2.size) * itemsize
    flops = 2 * B * B * D_pad + 6 * B * N * D_pad + 10 * B * B
    transcendentals = B * B + 3 * B                   # exp on (B,B); rsqrt/log on (B,1)
    bytes_accessed = x_bytes + B * D_pad * itemsize + 16 + 8

    # VMEM footprint: resident full x + pipelined positive blocks + anchor scratch + temporaries.
    needed = (B * N * D_pad * itemsize
              + 2 * TB * D_pad * itemsize
              + B_pad * D_pad * anc_itemsize
              + 6 * TB * max(B, D_pad) * 4)
    try:
        cap = int(getattr(pltpu.get_tpu_info(), "vmem_capacity_bytes", 128 << 20))
    except Exception:                                 # e.g. no TPU attached / interpret mode
        cap = 128 << 20
    vmem_limit = int(min(3 * cap // 4, max(32 << 20, 2 * needed)))

    kernel = functools.partial(angleproto_kernel, n_per_speaker=N, emb_dim=D_pad,
                               batch=B, block_rows=TB)

    loss, prec = pl.pallas_call(
        kernel,
        out_shape=(
            jax.ShapeDtypeStruct((1, 1), jnp.float32),
            jax.ShapeDtypeStruct((1, 1), jnp.float32),
        ),
        grid=(nblocks,),
        in_specs=[
            # positive rows of this block: first D_pad lanes of the flattened row
            pl.BlockSpec((TB, D_pad), lambda i: (i, 0)),
            # full x, resident across the grid (anchor matrix built from it once, at step 0)
            pl.BlockSpec((B, N * D_pad), lambda i: (0, 0)),
            pl.BlockSpec((1, 1), lambda i: (0, 0), memory_space=pltpu.MemorySpace.SMEM),
            pl.BlockSpec((1, 1), lambda i: (0, 0), memory_space=pltpu.MemorySpace.SMEM),
        ],
        out_specs=(
            pl.BlockSpec((1, 1), lambda i: (0, 0), memory_space=pltpu.MemorySpace.SMEM),
            pl.BlockSpec((1, 1), lambda i: (0, 0), memory_space=pltpu.MemorySpace.SMEM),
        ),
        scratch_shapes=[pltpu.VMEM((B_pad, D_pad), anc_dtype)],   # normalized anchor matrix
        compiler_params=pltpu.CompilerParams(
            dimension_semantics=("arbitrary",),       # accumulation across row blocks
            vmem_limit_bytes=vmem_limit),
        cost_estimate=pl.CostEstimate(flops=flops,
                                      transcendentals=transcendentals,
                                      bytes_accessed=bytes_accessed),
    )(x2, x2, w_arr, b_arr)
    return loss[0, 0], prec[0, 0]


def _reference(x, w, b):
    # pure-JAX reference mirroring the PyTorch forward
    x = x.astype(jnp.float32)
    pos = x[:, 0, :]
    anc = jnp.mean(x[:, 1:, :], axis=1)
    dots = pos @ anc.T
    denom = jnp.maximum(
        jnp.linalg.norm(pos, axis=-1, keepdims=True)
        * jnp.linalg.norm(anc, axis=-1, keepdims=True).T,
        1e-8,
    )
    logits = (dots / denom) * w + b
    B = x.shape[0]
    labels = jnp.arange(B)
    logp = jax.nn.log_softmax(logits, axis=-1)
    loss = -jnp.mean(logp[jnp.arange(B), labels])
    prec = 100.0 * jnp.mean((jnp.argmax(logits, axis=-1) == labels).astype(jnp.float32))
    return loss, prec


if __name__ == "__main__":
    key = jax.random.PRNGKey(0)
    B, N, D = 8, 3, 128           # batch, nPerSpeaker, embedding dim
    x = jax.random.normal(key, (B, N, D), dtype=jnp.float32)

    init_w, init_b = 10.0, -5.0   # deterministic parameter init from __init__

    nloss, prec1 = angleproto_loss(x, init_w, init_b)
    jax.block_until_ready((nloss, prec1))

    ref_loss, ref_prec = _reference(x, init_w, init_b)
    assert jnp.allclose(nloss, ref_loss, rtol=1e-3, atol=1e-3), (nloss, ref_loss)
    assert jnp.allclose(prec1, ref_prec, rtol=1e-3, atol=1e-3), (prec1, ref_prec)

    # bf16 embedding path: bf16 HBM bytes and bf16 MXU operands; VPU/EUP math stays f32.
    x_bf16 = x.astype(jnp.bfloat16)
    nloss_b, prec1_b = angleproto_loss(x_bf16, init_w, init_b)
    jax.block_until_ready((nloss_b, prec1_b))
    ref_loss_b, ref_prec_b = _reference(x_bf16, init_w, init_b)
    # bf16 MXU operands shift logits by ~1e-2 (w=10): loosen the loss tolerance and allow at
    # most one argmax flip for the accuracy.
    assert jnp.allclose(nloss_b, ref_loss_b, rtol=3e-2, atol=3e-2), (nloss_b, ref_loss_b)
    assert abs(float(prec1_b) - float(ref_prec_b)) <= 100.0 / B + 1e-3, (prec1_b, ref_prec_b)

    print("KERNEL_OK")
</pallas_src>

<mosaic_0001>
module attributes {stable_mosaic.version = 11 : i64} {
  func.func @angleproto_kernel(%arg0: i32, %arg1: memref<8x128xf32, #tpu.memory_space<vmem>>, %arg2: memref<8x384xf32, #tpu.memory_space<vmem>>, %arg3: memref<1x1xf32, #tpu.memory_space<smem>>, %arg4: memref<1x1xf32, #tpu.memory_space<smem>>, %arg5: memref<1x1xf32, #tpu.memory_space<smem>>, %arg6: memref<1x1xf32, #tpu.memory_space<smem>>, %arg7: memref<8x128xf32, #tpu.memory_space<vmem>>) attributes {dimension_semantics = [#tpu.dimension_semantics<arbitrary>], iteration_bounds = array<i64: 1>, scalar_prefetch = 0 : i64, scratch_operands = 1 : i64, tpu.core_type = #tpu.core_type<tc>, window_params = [{transform_indices = @transform_0, window_bounds = array<i64: 8, 128>}, {pipeline_mode = #tpu.pipeline_mode<synchronous>, transform_indices = @transform_1, window_bounds = array<i64: 8, 384>}, {transform_indices = @transform_2, window_bounds = array<i64: 1, 1>}, {transform_indices = @transform_3, window_bounds = array<i64: 1, 1>}, {transform_indices = @transform_4, window_bounds = array<i64: 1, 1>}, {transform_indices = @transform_5, window_bounds = array<i64: 1, 1>}]} {
    %c0_i32 = arith.constant 0 : i32
    %0 = arith.cmpi eq, %arg0, %c0_i32 : i32
    %1 = arith.extui %0 : i1 to i32
    %c0_i32_0 = arith.constant 0 : i32
    %2 = arith.cmpi ne, %1, %c0_i32_0 : i32
    scf.if %2 {
      %cst_32 = arith.constant 0.000000e+00 : f32
      %76 = vector.broadcast %cst_32 : f32 to vector<8x128xf32>
      %c0_33 = arith.constant 0 : index
      %c0_34 = arith.constant 0 : index
      %77 = vector.load %arg7[%c0_33, %c0_34] : memref<8x128xf32, #tpu.memory_space<vmem>>, vector<8x128xf32>
      tpu.vector_store %arg7[%c0_33, %c0_34], %76 {strides = array<i32>} : memref<8x128xf32, #tpu.memory_space<vmem>>, vector<8x128xf32>,
      %c0_35 = arith.constant 0 : index
      %c128 = arith.constant 128 : index
      %78 = vector.load %arg2[%c0_35, %c128] : memref<8x384xf32, #tpu.memory_space<vmem>>, vector<8x128xf32>
      %c0_36 = arith.constant 0 : index
      %c256 = arith.constant 256 : index
      %79 = vector.load %arg2[%c0_36, %c256] : memref<8x384xf32, #tpu.memory_space<vmem>>, vector<8x128xf32>
      %80 = arith.addf %78, %79 : vector<8x128xf32>
      %81 = arith.mulf %80, %80 : vector<8x128xf32>
      %cst_37 = arith.constant dense<0.000000e+00> : vector<8xf32>
      %82 = vector.multi_reduction <add>, %81, %cst_37 [1] : vector<8x128xf32> to vector<8xf32>
      %83 = vector.shape_cast %82 : vector<8xf32> to vector<8x1xf32>
      %cst_38 = arith.constant 1.000000e-16 : f32
      %84 = vector.broadcast %cst_38 : f32 to vector<8x1xf32>
      %85 = arith.maximumf %83, %84 : vector<8x1xf32>
      %86 = math.rsqrt %85 : vector<8x1xf32>
      %87 = vector.broadcast %86 : vector<8x1xf32> to vector<8x128xf32>
      %88 = arith.mulf %80, %87 : vector<8x128xf32>
      %c0_39 = arith.constant 0 : index
      %c0_40 = arith.constant 0 : index
      %89 = vector.load %arg7[%c0_39, %c0_40] : memref<8x128xf32, #tpu.memory_space<vmem>>, vector<8x128xf32>
      tpu.vector_store %arg7[%c0_39, %c0_40], %88 {strides = array<i32>} : memref<8x128xf32, #tpu.memory_space<vmem>>, vector<8x128xf32>,
      %cst_41 = arith.constant 0.000000e+00 : f32
      %c0_42 = arith.constant 0 : index
      %c0_43 = arith.constant 0 : index
      %90 = memref.load %arg5[%c0_42, %c0_43] : memref<1x1xf32, #tpu.memory_space<smem>>
      memref.store %cst_41, %arg5[%c0_42, %c0_43] : memref<1x1xf32, #tpu.memory_space<smem>>
      %cst_44 = arith.constant 0.000000e+00 : f32
      %c0_45 = arith.constant 0 : index
      %c0_46 = arith.constant 0 : index
      %91 = memref.load %arg6[%c0_45, %c0_46] : memref<1x1xf32, #tpu.memory_space<smem>>
      memref.store %cst_44, %arg6[%c0_45, %c0_46] : memref<1x1xf32, #tpu.memory_space<smem>>
    } else {
    }
    %c0 = arith.constant 0 : index
    %c0_1 = arith.constant 0 : index
    %3 = vector.load %arg1[%c0, %c0_1] : memref<8x128xf32, #tpu.memory_space<vmem>>, vector<8x128xf32>
    %4 = arith.mulf %3, %3 : vector<8x128xf32>
    %cst = arith.constant dense<0.000000e+00> : vector<8xf32>
    %5 = vector.multi_reduction <add>, %4, %cst [1] : vector<8x128xf32> to vector<8xf32>
    %6 = vector.shape_cast %5 : vector<8xf32> to vector<8x1xf32>
    %cst_2 = arith.constant 1.000000e-16 : f32
    %7 = vector.broadcast %cst_2 : f32 to vector<8x1xf32>
    %8 = arith.maximumf %6, %7 : vector<8x1xf32>
    %9 = math.rsqrt %8 : vector<8x1xf32>
    %10 = vector.broadcast %9 : vector<8x1xf32> to vector<8x128xf32>
    %11 = arith.mulf %3, %10 : vector<8x128xf32>
    %c0_3 = arith.constant 0 : index
    %c0_4 = arith.constant 0 : index
    %12 = memref.load %arg3[%c0_3, %c0_4] : memref<1x1xf32, #tpu.memory_space<smem>>
    %c0_5 = arith.constant 0 : index
    %c0_6 = arith.constant 0 : index
    %13 = memref.load %arg4[%c0_5, %c0_6] : memref<1x1xf32, #tpu.memory_space<smem>>
    %c0_7 = arith.constant 0 : index
    %c0_8 = arith.constant 0 : index
    %14 = vector.load %arg7[%c0_7, %c0_8] : memref<8x128xf32, #tpu.memory_space<vmem>>, vector<8x128xf32>
    %cst_9 = arith.constant dense<0.000000e+00> : vector<8x8xf32>
    %15 = tpu.matmul %11, %14, %cst_9 {dimension_numbers = #tpu.dot_dimension_numbers<[1], [1], [0], [0], [0, 0, 1, 0], [], []>} : vector<8x128xf32>, vector<8x128xf32>, vector<8x8xf32> -> vector<8x8xf32>
    %16 = vector.broadcast %12 : f32 to vector<8x8xf32>
    %17 = arith.mulf %15, %16 : vector<8x8xf32>
    %18 = vector.broadcast %13 : f32 to vector<8x8xf32>
    %19 = arith.addf %17, %18 : vector<8x8xf32>
    %c8_i32 = arith.constant 8 : i32
    %20 = arith.muli %arg0, %c8_i32 : i32
    %21 = arith.index_cast %20 : i32 to index
    %c0_10 = arith.constant 0 : index
    %22 = vector.load %arg7[%21, %c0_10] : memref<8x128xf32, #tpu.memory_space<vmem>>, vector<8x128xf32>
    %23 = arith.mulf %11, %22 : vector<8x128xf32>
    %cst_11 = arith.constant dense<0.000000e+00> : vector<8xf32>
    %24 = vector.multi_reduction <add>, %23, %cst_11 [1] : vector<8x128xf32> to vector<8xf32>
    %25 = vector.shape_cast %24 : vector<8xf32> to vector<8x1xf32>
    %26 = vector.broadcast %12 : f32 to vector<8x1xf32>
    %27 = arith.mulf %25, %26 : vector<8x1xf32>
    %28 = vector.broadcast %13 : f32 to vector<8x1xf32>
    %29 = arith.addf %27, %28 : vector<8x1xf32>
    %cst_12 = arith.constant dense<0xFF800000> : vector<8xf32>
    %30 = vector.multi_reduction <maximumf>, %19, %cst_12 [1] : vector<8x8xf32> to vector<8xf32>
    %31 = vector.shape_cast %30 : vector<8xf32> to vector<8x1xf32>
    %32 = vector.broadcast %31 : vector<8x1xf32> to vector<8x8xf32>
    %33 = arith.subf %19, %32 : vector<8x8xf32>
    %34 = math.exp %33 : vector<8x8xf32>
    %cst_13 = arith.constant dense<0.000000e+00> : vector<8xf32>
    %35 = vector.multi_reduction <add>, %34, %cst_13 [1] : vector<8x8xf32> to vector<8xf32>
    %36 = vector.shape_cast %35 : vector<8xf32> to vector<8x1xf32>
    %37 = math.log %36 : vector<8x1xf32>
    %38 = arith.addf %31, %37 : vector<8x1xf32>
    %39 = tpu.iota {dimensions = array<i32: 1>} : vector<8x8xi32>
    %40 = vector.broadcast %31 : vector<8x1xf32> to vector<8x8xf32>
    %41 = arith.cmpf oeq, %19, %40 : vector<8x8xf32>
    %c8_i32_14 = arith.constant 8 : i32
    %42 = vector.broadcast %c8_i32_14 : i32 to vector<8x8xi32>
    %43 = arith.select %41, %39, %42 : vector<8x8xi1>, vector<8x8xi32>
    %cst_15 = arith.constant dense<2147483647> : vector<8xi32>
    %44 = vector.multi_reduction <minsi>, %43, %cst_15 [1] : vector<8x8xi32> to vector<8xi32>
    %45 = vector.shape_cast %44 : vector<8xi32> to vector<8x1xi32>
    %46 = tpu.iota {dimensions = array<i32: 0>} : vector<8x1xi32>
    %47 = vector.broadcast %20 : i32 to vector<8x1xi32>
    %48 = arith.addi %47, %46 : vector<8x1xi32>
    %c8_i32_16 = arith.constant 8 : i32
    %49 = vector.broadcast %c8_i32_16 : i32 to vector<8x1xi32>
    %50 = arith.cmpi slt, %48, %49 : vector<8x1xi32>
    %c0_17 = arith.constant 0 : index
    %c0_18 = arith.constant 0 : index
    %51 = memref.load %arg5[%c0_17, %c0_18] : memref<1x1xf32, #tpu.memory_space<smem>>
    %52 = arith.subf %38, %29 : vector<8x1xf32>
    %cst_19 = arith.constant 0.000000e+00 : f32
    %53 = vector.broadcast %cst_19 : f32 to vector<8x1xf32>
    %54 = arith.select %50, %52, %53 : vector<8x1xi1>, vector<8x1xf32>
    %55 = vector.shape_cast %54 : vector<8x1xf32> to vector<1x8x1xf32>
    %cst_20 = arith.constant dense<0.000000e+00> : vector<1xf32>
    %56 = vector.multi_reduction <add>, %55, %cst_20 [1, 2] : vector<1x8x1xf32> to vector<1xf32>
    %57 = vector.shape_cast %56 : vector<1xf32> to vector<1x1x1xf32>
    %58 = vector.extract %57[0, 0, 0] : f32 from vector<1x1x1xf32>
    %59 = arith.addf %51, %58 : f32
    %c0_21 = arith.constant 0 : index
    %c0_22 = arith.constant 0 : index
    %60 = memref.load %arg5[%c0_21, %c0_22] : memref<1x1xf32, #tpu.memory_space<smem>>
    memref.store %59, %arg5[%c0_21, %c0_22] : memref<1x1xf32, #tpu.memory_space<smem>>
    %c0_23 = arith.constant 0 : index
    %c0_24 = arith.constant 0 : index
    %61 = memref.load %arg6[%c0_23, %c0_24] : memref<1x1xf32, #tpu.memory_space<smem>>
    %62 = arith.cmpi eq, %45, %48 : vector<8x1xi32>
    %63 = arith.andi %50, %62 : vector<8x1xi1>
    %cst_25 = arith.constant 1.000000e+00 : f32
    %cst_26 = arith.constant 0.000000e+00 : f32
    %64 = vector.broadcast %cst_25 : f32 to vector<8x1xf32>
    %65 = vector.broadcast %cst_26 : f32 to vector<8x1xf32>
    %66 = arith.select %63, %64, %65 : vector<8x1xi1>, vector<8x1xf32>
    %67 = vector.shape_cast %66 : vector<8x1xf32> to vector<1x8x1xf32>
    %cst_27 = arith.constant dense<0.000000e+00> : vector<1xf32>
    %68 = vector.multi_reduction <add>, %67, %cst_27 [1, 2] : vector<1x8x1xf32> to vector<1xf32>
    %69 = vector.shape_cast %68 : vector<1xf32> to vector<1x1x1xf32>
    %70 = vector.extract %69[0, 0, 0] : f32 from vector<1x1x1xf32>
    %71 = arith.addf %61, %70 : f32
    %c0_28 = arith.constant 0 : index
    %c0_29 = arith.constant 0 : index
    %72 = memref.load %arg6[%c0_28, %c0_29] : memref<1x1xf32, #tpu.memory_space<smem>>
    memref.store %71, %arg6[%c0_28, %c0_29] : memref<1x1xf32, #tpu.memory_space<smem>>
    %c0_i32_30 = arith.constant 0 : i32
    %73 = arith.cmpi eq, %arg0, %c0_i32_30 : i32
    %74 = arith.extui %73 : i1 to i32
    %c0_i32_31 = arith.constant 0 : i32
    %75 = arith.cmpi ne, %74, %c0_i32_31 : i32
    scf.if %75 {
      %c0_32 = arith.constant 0 : index
      %c0_33 = arith.constant 0 : index
      %76 = memref.load %arg5[%c0_32, %c0_33] : memref<1x1xf32, #tpu.memory_space<smem>>
      %cst_34 = arith.constant 1.250000e-01 : f32
      %77 = arith.mulf %76, %cst_34 : f32
      %c0_35 = arith.constant 0 : index
      %c0_36 = arith.constant 0 : index
      %78 = memref.load %arg5[%c0_35, %c0_36] : memref<1x1xf32, #tpu.memory_space<smem>>
      memref.store %77, %arg5[%c0_35, %c0_36] : memref<1x1xf32, #tpu.memory_space<smem>>
      %c0_37 = arith.constant 0 : index
      %c0_38 = arith.constant 0 : index
      %79 = memref.load %arg6[%c0_37, %c0_38] : memref<1x1xf32, #tpu.memory_space<smem>>
      %cst_39 = arith.constant 1.250000e+01 : f32
      %80 = arith.mulf %79, %cst_39 : f32
      %c0_40 = arith.constant 0 : index
      %c0_41 = arith.constant 0 : index
      %81 = memref.load %arg6[%c0_40, %c0_41] : memref<1x1xf32, #tpu.memory_space<smem>>
      memref.store %80, %arg6[%c0_40, %c0_41] : memref<1x1xf32, #tpu.memory_space<smem>>
    } else {
    }
    return
  }
  func.func @transform_0(%arg0: i32) -> (i32, i32) {
    %c0_i32 = arith.constant 0 : i32
    %c0_i32_0 = arith.constant 0 : i32
    return %arg0, %c0_i32 : i32, i32
  }
  func.func @transform_1(%arg0: i32) -> (i32, i32) {
    %c0_i32 = arith.constant 0 : i32
    %c0_i32_0 = arith.constant 0 : i32
    %c0_i32_1 = arith.constant 0 : i32
    return %c0_i32, %c0_i32_0 : i32, i32
  }
  func.func @transform_2(%arg0: i32) -> (i32, i32) {
    %c0_i32 = arith.constant 0 : i32
    %c0_i32_0 = arith.constant 0 : i32
    %c0_i32_1 = arith.constant 0 : i32
    return %c0_i32, %c0_i32_0 : i32, i32
  }
  func.func @transform_3(%arg0: i32) -> (i32, i32) {
    %c0_i32 = arith.constant 0 : i32
    %c0_i32_0 = arith.constant 0 : i32
    %c0_i32_1 = arith.constant 0 : i32
    return %c0_i32, %c0_i32_0 : i32, i32
  }
  func.func @transform_4(%arg0: i32) -> (i32, i32) {
    %c0_i32 = arith.constant 0 : i32
    %c0_i32_0 = arith.constant 0 : i32
    %c0_i32_1 = arith.constant 0 : i32
    return %c0_i32, %c0_i32_0 : i32, i32
  }
  func.func @transform_5(%arg0: i32) -> (i32, i32) {
    %c0_i32 = arith.constant 0 : i32
    %c0_i32_0 = arith.constant 0 : i32
    %c0_i32_1 = arith.constant 0 : i32
    return %c0_i32, %c0_i32_0 : i32, i32
  }
}

</mosaic_0001>

<llo_original>
// kernel: tpu_custom_call.1
$region0: #{tpu_custom_call.1}
  #allocation0 [shape = 'u32[]', space=smem, size = 0x4, offset = 0x4, fixed_abs, tag = 'smem constant byte address 0x4 - core index']
  #allocation1 [shape = 'u32[144,128]{1,0:T(1,128)}', space=vmem, size = 0x12000, scoped, tag = 'internal scratch']
  #allocation2 [shape = 'f32[8,128]{1,0:T(8,128)}', space=vmem, size = 0x1000, scoped, tag = 'scratch operand']
  #allocation3 [shape = 'f32[1,1]{1,0:T(1,128)S(6)}', space=smem, size = 0x200, scoped, tag = 'scoped memory for tpu_custom_call.1']
  #allocation4 [shape = 'f32[1,1]{1,0:T(1,128)S(6)}', space=smem, size = 0x200, scoped, tag = 'scoped memory for tpu_custom_call.1']
  %s0 = inlined_call_operand.hbm [shape: f32[8,384], index: 0, kind: input, shape index: {}]
  %s1 = inlined_call_operand.hbm [shape: f32[8,384], index: 1, kind: input, shape index: {}]
  %s2 = inlined_call_operand.<no memory space> [shape: f32[1,1], index: 2, kind: input, shape index: {}]
  %s3 = inlined_call_operand.<no memory space> [shape: f32[1,1], index: 3, kind: input, shape index: {}]
  %s4 = inlined_call_operand.hbm [shape: f32[1,1], index: 4, kind: output, shape index: {0}]
  %s5 = inlined_call_operand.hbm [shape: f32[1,1], index: 5, kind: output, shape index: {1}]
  %6 = xla_tuple %s4, %s5
  %s7 = sld [smem:[#allocation0]]
  $region50: #{tpu_custom_call.1} parent=0
    _
  %s9 = ssub.s32 1, %s7
  %s10 = scalar_select 0, %s9, %s7
  %11 = sst [smem:[#allocation3]] %s2
  %12 = sst [smem:[#allocation4]] %s3
  $region1: #{tpu_custom_call.1} parent=0
    #allocation5 [shape = 'u8[4096]{0}', space=vmem, size = 0x1000, scoped, tag = 'input window, operand 0, single buffered']
    #allocation6 [shape = 's32[1]{0}', space=sflag, size = 0x4, scoped, tag = 'scoped memory for tpu_custom_call.1']
    #allocation7 [shape = 's32[1]{0}', space=sflag, size = 0x4, scoped, tag = 'scoped memory for tpu_custom_call.1']
    #allocation8 [shape = 'u8[12288]{0}', space=vmem, size = 0x3000, scoped, tag = 'input window, operand 1, single buffered']
    #allocation9 [shape = 's32[1]{0}', space=sflag, size = 0x4, scoped, tag = 'scoped memory for tpu_custom_call.1']
    #allocation10 [shape = 'u8[512]{0}', space=smem, size = 0x200, scoped, tag = 'output window, operand 0, single buffered']
    #allocation11 [shape = 'u8[512]{0}', space=smem, size = 0x200, scoped, tag = 'output window, operand 1, single buffered']
    #allocation12 [shape = 's32[1]{0}', space=sflag, size = 0x4, scoped, tag = 'scoped memory for tpu_custom_call.1']
    %13 = vsyncpa [#allocation6], 0
    %14 = vsyncpa [#allocation9], 0
    %15 = vsyncpa [#allocation7], 0
    %16 = vsyncpa [#allocation12], 0
    // Predicated region
    $region2: #{tpu_custom_call.1} parent=1 // pred_check
      _
    $region3: #{tpu_custom_call.1} parent=1 // pred_check_branch
      %18 = sbr.rel (0) target = $region5
    $region4: #{tpu_custom_call.1} parent=1 // pred_region
      %s20 = ssub.s32 128, 128
      %21 = vsyncadd [#allocation6], %s20
      %s23 = sshll.u32 [#allocation5], 4
      %s24 = int_to_ptr.vmem [resolvable:$true] %s23
      %26 = dma.hbm_to_vmem [thread:$0]  %s0, 128, %s24, [#allocation6]
    $region5: #{tpu_custom_call.1} parent=1 // pred_fallthru
      _
    // Predicated region
    $region6: #{tpu_custom_call.1} parent=1 // pred_check
      _
    $region7: #{tpu_custom_call.1} parent=1 // pred_check_branch
      %28 = sbr.rel (0) target = $region9
    $region8: #{tpu_custom_call.1} parent=1 // pred_region
      %s30 = ssub.s32 384, 384
      %31 = vsyncadd [#allocation9], %s30
      %s33 = sshll.u32 [#allocation8], 4
      %s34 = int_to_ptr.vmem [resolvable:$true] %s33
      %36 = dma.hbm_to_vmem [thread:$0]  %s1, 384, %s34, [#allocation9]
    $region9: #{tpu_custom_call.1} parent=1 // pred_fallthru
      _
    // Predicated region
    $region10: #{tpu_custom_call.1} parent=1 // pred_check
      _
    $region11: #{tpu_custom_call.1} parent=1 // pred_check_branch
      %38 = sbr.rel (0) target = $region13
    $region12: #{tpu_custom_call.1} parent=1 // pred_region
      _
    $region13: #{tpu_custom_call.1} parent=1 // pred_fallthru
      _
    // Predicated region
    $region14: #{tpu_custom_call.1} parent=1 // pred_check
      _
    $region15: #{tpu_custom_call.1} parent=1 // pred_check_branch
      %40 = sbr.rel (0) target = $region17
    $region16: #{tpu_custom_call.1} parent=1 // pred_region
      _
    $region17: #{tpu_custom_call.1} parent=1 // pred_fallthru
      _
    // Predicated region
    $region18: #{tpu_custom_call.1} parent=1 // pred_check
      _
    $region19: #{tpu_custom_call.1} parent=1 // pred_check_branch
      %42 = sbr.rel (0) target = $region21
    $region20: #{tpu_custom_call.1} parent=1 // pred_region
      %43 = dma.done [#allocation6], 128
    $region21: #{tpu_custom_call.1} parent=1 // pred_fallthru
      _
    // Predicated region
    $region22: #{tpu_custom_call.1} parent=1 // pred_check
      _
    $region23: #{tpu_custom_call.1} parent=1 // pred_check_branch
      %45 = sbr.rel (0) target = $region25
    $region24: #{tpu_custom_call.1} parent=1 // pred_region
      %46 = dma.done [#allocation9], 384
    $region25: #{tpu_custom_call.1} parent=1 // pred_fallthru
      _
    %p47 = scmp.eq.s32.totalorder 0, 0
    // Predicated region
    $region26: #{tpu_custom_call.1} parent=1 // pred_check
      %p48 = pneg %p47
    $region27: #{tpu_custom_call.1} parent=1 // pred_check_branch
      %50 = sbr.rel (%p48) target = $region29
    $region28: #{tpu_custom_call.1} parent=1 // pred_region
      %51 = vst [vmem:[#allocation2] sm:$0xff] 0.0
      %v52 = vld [vmem:[#allocation8 + $0x8] sm:$0xff]
      %v53 = vld [vmem:[#allocation8 + $0x10] sm:$0xff]
      %v54 = vadd.f32 %v52, %v53
      %v55 = vmul.f32 %v54, %v54
      %56 = vadd.xlane.f32.xlu0 %v55
      %v57 = vpop.xlane.xlu0 %56
      %v58 = vmax.f32 %v57, 1e-16
      %v59 = vrsqrt.pop %v58
      %v60 = vmul.f32 %v54, %v59
      %61 = vst [vmem:[#allocation2] sm:$0xff] %v60
      %s62 = scalar_lea.smem [#allocation10], 0
      %63 = sst [smem:[%s62]] 0.0
      %s64 = scalar_lea.smem [#allocation11], 0
      %65 = sst [smem:[%s64]] 0.0
    $region29: #{tpu_custom_call.1} parent=1 // pred_fallthru
      _
    %v66 = vld [vmem:[#allocation5] sm:$0xff]
    %v67 = vmul.f32 %v66, %v66
    %68 = vadd.xlane.f32.xlu0 %v67
    %v69 = vpop.xlane.xlu0 %68
    %v70 = vmax.f32 %v69, 1e-16
    %v71 = vrsqrt.pop %v70
    %v72 = vmul.f32 %v66, %v71
    %s73 = sld [smem:[#allocation3]]
    %s74 = sld [smem:[#allocation4]]
    %v75 = vld [vmem:[#allocation2] sm:$0xff]
    %76 = vmatprep.subr.mxu0 0.0
    %77 = vmatpush1.xpose.msra.mxu0 0.0
    %78 = vmatprep.subr.mxu0 0.0
    %79 = vmatpush1.xpose.msra.mxu0 0.0
    %80 = vmatprep.subr.mxu0 0.0
    %81 = vmatpush1.xpose.msra.mxu0 0.0
    %82 = vmatprep.subr.mxu0 0.0
    %83 = vmatpush1.xpose.msra.mxu0 0.0
    %84 = vmatprep.subr.mxu0 0.0
    %85 = vmatpush1.xpose.msra.mxu0 0.0
    %86 = vmatprep.subr.mxu0 0.0
    %87 = vmatpush1.xpose.msra.mxu0 0.0
    %88 = vmatprep.subr.mxu0 0.0
    %89 = vmatpush1.xpose.msra.mxu0 0.0
    %90 = vmatprep.subr.mxu0 0.0
    %91 = vmatpush1.xpose.msra.mxu0 0.0
    %92 = vmatprep.subr.mxu0 0.0
    %93 = vmatpush1.xpose.msra.mxu0 0.0
    %94 = vmatprep.subr.mxu0 0.0
    %95 = vmatpush1.xpose.msra.mxu0 0.0
    %96 = vmatprep.subr.mxu0 0.0
    %97 = vmatpush1.xpose.msra.mxu0 0.0
    %98 = vmatprep.subr.mxu0 0.0
    %99 = vmatpush1.xpose.msra.mxu0 0.0
    %100 = vmatprep.subr.mxu0 0.0
    %101 = vmatpush1.xpose.msra.mxu0 0.0
    %102 = vmatprep.subr.mxu0 0.0
    %103 = vmatpush1.xpose.msra.mxu0 0.0
    %104 = vmatprep.subr.mxu0 0.0
    %105 = vmatpush1.xpose.msra.mxu0 0.0
    %106 = vmatprep.subr.mxu0 0.0
    %107 = vmatpush1.xpose.msra.mxu0 %v75
    %108 = vmatprep.subr.mxu0 0.0
    %109 = vmatpush2.xpose.msra.mxu0 0.0
    %110 = vmatprep.subr.mxu0 0.0
    %111 = vmatpush2.xpose.msra.mxu0 0.0
    %112 = vmatprep.subr.mxu0 0.0
    %113 = vmatpush2.xpose.msra.mxu0 0.0
    %114 = vmatprep.subr.mxu0 0.0
    %115 = vmatpush2.xpose.msra.mxu0 0.0
    %116 = vmatprep.subr.mxu0 0.0
    %117 = vmatpush2.xpose.msra.mxu0 0.0
    %118 = vmatprep.subr.mxu0 0.0
    %119 = vmatpush2.xpose.msra.mxu0 0.0
    %120 = vmatprep.subr.mxu0 0.0
    %121 = vmatpush2.xpose.msra.mxu0 0.0
    %122 = vmatprep.subr.mxu0 0.0
    %123 = vmatpush2.xpose.msra.mxu0 0.0
    %124 = vmatprep.subr.mxu0 0.0
    %125 = vmatpush2.xpose.msra.mxu0 0.0
    %126 = vmatprep.subr.mxu0 0.0
    %127 = vmatpush2.xpose.msra.mxu0 0.0
    %128 = vmatprep.subr.mxu0 0.0
    %129 = vmatpush2.xpose.msra.mxu0 0.0
    %130 = vmatprep.subr.mxu0 0.0
    %131 = vmatpush2.xpose.msra.mxu0 0.0
    %132 = vmatprep.subr.mxu0 0.0
    %133 = vmatpush2.xpose.msra.mxu0 0.0
    %134 = vmatprep.subr.mxu0 0.0
    %135 = vmatpush2.xpose.msra.mxu0 0.0
    %136 = vmatprep.subr.mxu0 0.0
    %137 = vmatpush2.xpose.msra.mxu0 0.0
    %138 = vmatprep.subr.mxu0 0.0
    %139 = vmatpush2.xpose.msra.mxu0 0.0
    %140 = vmatprep.mubr.f32.mxu0 0.0
    %141 = vmatmul.mubr.f32.gmra.mxu0 %v72
    %v142 = vpop.f32.mrf.mxu0
    %v143 = vadd.f32 0.0, %v142
    %v144 = vpop.f32.mrf.mxu0
    %145 = vdwg.mxu0
    %v146 = vstv %s73
    %v147 = vmul.f32 %v143, %v146
    %v148 = vstv %s74
    %v149 = vadd.f32 %v147, %v148
    %s150 = smul.u32 0, 8
    %s151 = scalar_lea.vmem [#allocation2], %s150
    %v152 = vld [vmem:[%s151] sm:$0xff]
    %v153 = vmul.f32 %v72, %v152
    %154 = vadd.xlane.f32.xlu0 %v153
    %v155 = vpop.xlane.xlu0 %154
    %v156 = vmul.f32 %v155, %v146
    %v157 = vadd.f32 %v156, %v148
    %vm158 = vcmask 64512
    %v159 = vsel %vm158, %v149, -inf
    %160 = vmax.xlane.f32.xlu0 %v159
    %v161 = vpop.xlane.xlu0 %160
    %v162 = vsub.f32 %v149, %v161
    %v163 = vmul.f32 %v162, 1.442695
    %v164 = vpow.pop %v163
    %v165 = vsel %vm158, %v164, 0.0
    %166 = vadd.xlane.f32.xlu0 %v165
    %v167 = vpop.xlane.xlu0 %166
    %v168 = vlog2.pop %v167
    %v169 = vmul.f32 %v168, 0.6931472
    %v170 = vadd.f32 %v161, %v169
    %v171 = vlaneseq
    %v172 = vand.u32 %v171, 127
    %vm173 = vcmp.eq.f32.partialorder %v149, %v161
    %v174 = vsel %vm173, %v172, 8
    %v175 = vsel %vm158, %v174, 2147483647
    %v176 = vand.u32 %v175, 65535
    %v177 = vshra.s32 %v175, 16
    %v178 = vcvt.s32.f32 %v176
    %v179 = vcvt.s32.f32 %v177
    %180 = vmin.xlane.f32.xlu0 %v179
    %v181 = vpop.xlane.xlu0 %180
    %vm182 = vcmp.eq.f32.partialorder %v179, %v181
    %v183 = vsel %vm182, %v178, inf
    %184 = vmin.xlane.f32.xlu0 %v183
    %v185 = vpop.xlane.xlu0 %184
    %v186 = vcvt.f32.s32 %v185
    %v187 = vcvt.f32.s32 %v181
    %v188 = vshll.u32 %v187, 16
    %v189 = vadd.s32 %v188, %v186
    %v190 = vlaneseq
    %v191 = vshrl.u32 %v190, 7
    %v192 = vstv %s150
    %v193 = vadd.s32 %v192, %v191
    %vm194 = vcmp.lt.s32.totalorder %v193, 8
    %s195 = sld [smem:[#allocation10]]
    %v196 = vsub.f32 %v170, %v157
    %v197 = vsel %vm194, %v196, 0.0
    %vm198 = vcmask 7168
    %v199 = vsel %vm198, %v197, 0.0
    %200 = vadd.xlane.f32.xlu0 %v199
    %v201 = vpop.xlane.xlu0 %200
    %v202 = vrot.slane %v201, 4
    %v203 = vadd.f32 %v201, %v202
    %v204 = vrot.slane %v203, 2
    %v205 = vadd.f32 %v203, %v204
    %v206 = vrot.slane %v205, 1
    %v207 = vadd.f32 %v205, %v206
    %s208 = vtos %v207
    %s209 = sadd.f32 %s195, %s208
    %s210 = scalar_lea.smem [#allocation10], 0
    %211 = sst [smem:[%s210]] %s209
    %s212 = sld [smem:[#allocation11]]
    %vm213 = vcmp.eq.s32.totalorder %v189, %v193
    %vm214 = vmand %vm194, %vm213
    %v215 = vsel %vm214, 1.0, 0.0
    %v216 = vsel %vm198, %v215, 0.0
    %217 = vadd.xlane.f32.xlu0 %v216
    %v218 = vpop.xlane.xlu0 %217
    %v219 = vrot.slane %v218, 4
    %v220 = vadd.f32 %v218, %v219
    %v221 = vrot.slane %v220, 2
    %v222 = vadd.f32 %v220, %v221
    %v223 = vrot.slane %v222, 1
    %v224 = vadd.f32 %v222, %v223
    %s225 = vtos %v224
    %s226 = sadd.f32 %s212, %s225
    %s227 = scalar_lea.smem [#allocation11], 0
    %228 = sst [smem:[%s227]] %s226
    // Predicated region
    $region30: #{tpu_custom_call.1} parent=1 // pred_check
      %p229 = pneg %p47
    $region31: #{tpu_custom_call.1} parent=1 // pred_check_branch
      %231 = sbr.rel (%p229) target = $region33
    $region32: #{tpu_custom_call.1} parent=1 // pred_region
      %s232 = sld [smem:[#allocation10]]
      %s233 = smul.f32 %s232, 0.125
      %234 = sst [smem:[%s210]] %s233
      %s235 = sld [smem:[#allocation11]]
      %s236 = smul.f32 %s235, 12.5
      %237 = sst [smem:[%s227]] %s236
    $region33: #{tpu_custom_call.1} parent=1 // pred_fallthru
      _
    // Predicated region
    $region34: #{tpu_custom_call.1} parent=1 // pred_check
      _
    $region35: #{tpu_custom_call.1} parent=1 // pred_check_branch
      %239 = sbr.rel (0) target = $region37
    $region36: #{tpu_custom_call.1} parent=1 // pred_region
      %s241 = ssub.s32 16, 16
      %242 = vsyncadd [#allocation7], %s241
      %245 = dma.smem_to_hbm [#allocation10], 16, %s4, [#allocation7]
    $region37: #{tpu_custom_call.1} parent=1 // pred_fallthru
      _
    // Predicated region
    $region38: #{tpu_custom_call.1} parent=1 // pred_check
      _
    $region39: #{tpu_custom_call.1} parent=1 // pred_check_branch
      %247 = sbr.rel (0) target = $region41
    $region40: #{tpu_custom_call.1} parent=1 // pred_region
      %s249 = ssub.s32 16, 16
      %250 = vsyncadd [#allocation12], %s249
      %253 = dma.smem_to_hbm [#allocation11], 16, %s5, [#allocation12]
    $region41: #{tpu_custom_call.1} parent=1 // pred_fallthru
      _
    // Predicated region
    $region42: #{tpu_custom_call.1} parent=1 // pred_check
      _
    $region43: #{tpu_custom_call.1} parent=1 // pred_check_branch
      %255 = sbr.rel (0) target = $region45
    $region44: #{tpu_custom_call.1} parent=1 // pred_region
      %256 = dma.done [#allocation7], 16
    $region45: #{tpu_custom_call.1} parent=1 // pred_fallthru
      _
    // Predicated region
    $region46: #{tpu_custom_call.1} parent=1 // pred_check
      _
    $region47: #{tpu_custom_call.1} parent=1 // pred_check_branch
      %258 = sbr.rel (0) target = $region49
    $region48: #{tpu_custom_call.1} parent=1 // pred_region
      %259 = dma.done [#allocation12], 16
    $region49: #{tpu_custom_call.1} parent=1 // pred_fallthru
      _
    %260 = sfence
    %261 = vsyncpa [#allocation6], 1
    %262 = vsyncpa [#allocation9], 1
    %263 = vsyncpa [#allocation7], 1
    %264 = vsyncpa [#allocation12], 1

</llo_original>
